<compile_context>
chip_gen: v5e
topology: v5e:2x2
jax: 0.10.0
libtpu: 0.0.40
codegen_flags: <defaults>
</compile_context>

<pallas_src>
import jax
import jax.numpy as jnp
from jax.experimental import pallas as pl
from jax.experimental.pallas import tpu as pltpu

EMB_SIZE = 768
CONTRAST_DIM = 128
ALPHA = 1.0
_POWER = (ALPHA + 1.0) / 2.0          # == 1.0 for the default alpha

_MAX_BATCH_TILE = 512                 # rows per grid step (mem-bound: bigger tile -> higher roofline %)
_TILE_ALIGN = 16                      # bf16 sublane packing
_MIN_GRID_STEPS = 2                   # engage both v7x TensorCores via the "parallel" batch axis
_VMEM_LIMIT_BYTES = 32 * 1024 * 1024

_COMPILER_PARAMS = pltpu.CompilerParams(
    dimension_semantics=("parallel",),
    vmem_limit_bytes=_VMEM_LIMIT_BYTES,
)


def _round_up(x, m):
    return (x + m - 1) // m * m


def _cdiv(a, b):
    return -(-a // b)


def _plan_batch(b):
    """Return (padded_batch, batch_tile).

    Tile <= 512 rows, 16-aligned; >= 2 grid steps whenever the batch allows it (v7x dual-TC);
    padding kept near one alignment boundary instead of rounding B up to a full max tile.
    """
    bp = _round_up(b, _TILE_ALIGN)
    steps = max(_MIN_GRID_STEPS, _cdiv(bp, _MAX_BATCH_TILE))
    steps = max(1, min(steps, bp // _TILE_ALIGN))
    bt = _round_up(_cdiv(bp, steps), _TILE_ALIGN)
    return bt * steps, bt


def _pad_rows(x, bp):
    b = x.shape[0]
    return x if b == bp else jnp.pad(x, ((0, bp - b), (0, 0)))


def _weight_specs(d, o):
    return [
        pl.BlockSpec((d, d), lambda i: (0, 0)),   # W1 (bf16) resident
        pl.BlockSpec((1, d), lambda i: (0, 0)),   # b1 resident
        pl.BlockSpec((d, o), lambda i: (0, 0)),   # W2 (bf16) resident
        pl.BlockSpec((1, o), lambda i: (0, 0)),   # b2 resident
    ]


# --------------------------------------------------------------------------
# Kernel 1: cluster probability (Student's t-distribution soft assignment)
# --------------------------------------------------------------------------
def _cluster_prob_body(e16, ct_ref, csq_ref):
    e32 = e16.astype(jnp.float32)
    # ||e - c||^2 = ||e||^2 + ||c||^2 - 2 e.c^T ; cross term on the MXU (bf16 in, f32 acc).
    e_sq = jnp.sum(e32 * e32, axis=1, keepdims=True)                       # (bt, 1) f32
    cross = jnp.dot(e16, ct_ref[...], preferred_element_type=jnp.float32)  # (bt, K) f32
    norm_sq = jnp.maximum(e_sq + csq_ref[...] - 2.0 * cross, 0.0)
    numerator = pl.reciprocal(1.0 + norm_sq * (1.0 / ALPHA), approx=True)  # EUP slot
    if _POWER != 1.0:  # trace-time guard: pow is a no-op when alpha == 1
        numerator = numerator ** _POWER
    # Exact divide for the final normalization -> rows sum to 1 to f32 precision.
    return numerator / jnp.sum(numerator, axis=1, keepdims=True)


def _cluster_prob_kernel(emb_ref, ct_ref, csq_ref, out_ref):
    out_ref[...] = _cluster_prob_body(emb_ref[...], ct_ref, csq_ref)


def _prep_centers(cluster_centers):
    c16 = cluster_centers.astype(jnp.bfloat16)
    ct = c16.T                                                              # (D, K) bf16
    c_sq = jnp.sum(c16.astype(jnp.float32) ** 2, axis=1, keepdims=True).T  # (1, K) f32
    return ct, c_sq


def get_cluster_prob(embeddings, cluster_centers):
    B, D = embeddings.shape
    K = cluster_centers.shape[0]
    Bp, bt = _plan_batch(B)

    x = _pad_rows(embeddings.astype(jnp.bfloat16), Bp)   # bf16 stream, no f32 widening
    ct, c_sq = _prep_centers(cluster_centers)            # hoisted per-centroid constants

    out = pl.pallas_call(
        _cluster_prob_kernel,
        out_shape=jax.ShapeDtypeStruct((Bp, K), jnp.float32),
        grid=(Bp // bt,),
        in_specs=[
            pl.BlockSpec((bt, D), lambda i: (i, 0)),     # batch tile streams
            pl.BlockSpec((D, K), lambda i: (0, 0)),      # centers^T resident (native MXU feed)
            pl.BlockSpec((1, K), lambda i: (0, 0)),      # ||c||^2 resident
        ],
        out_specs=pl.BlockSpec((bt, K), lambda i: (i, 0)),
        compiler_params=_COMPILER_PARAMS,
    )(x, ct, c_sq)
    return out[:B]


# --------------------------------------------------------------------------
# Kernel 2: contrast head  (Linear -> ReLU -> Linear -> L2 normalize, dim=1)
# --------------------------------------------------------------------------
def _contrast_body(x16, w1_ref, b1_ref, w2_ref, b2_ref):
    # bf16 operands on the MXU, f32 accumulate; bias / ReLU / normalize in f32.
    h = jnp.dot(x16, w1_ref[...], preferred_element_type=jnp.float32) + b1_ref[...]
    h = jnp.maximum(h, 0.0)                               # ReLU
    z = jnp.dot(h.astype(jnp.bfloat16), w2_ref[...],
                preferred_element_type=jnp.float32) + b2_ref[...]
    # F.normalize(z, dim=1): z / max(||z||, 1e-12)  ==  z * rsqrt(max(||z||^2, 1e-24))
    sumsq = jnp.sum(z * z, axis=1, keepdims=True)
    return z * jax.lax.rsqrt(jnp.maximum(sumsq, 1e-24))


def _contrast1_kernel(x_ref, w1_ref, b1_ref, w2_ref, b2_ref, out_ref):
    out_ref[...] = _contrast_body(x_ref[...], w1_ref, b1_ref, w2_ref, b2_ref)


def _contrast2_kernel(x1_ref, x2_ref, w1_ref, b1_ref, w2_ref, b2_ref, o1_ref, o2_ref):
    o1_ref[...] = _contrast_body(x1_ref[...], w1_ref, b1_ref, w2_ref, b2_ref)
    o2_ref[...] = _contrast_body(x2_ref[...], w1_ref, b1_ref, w2_ref, b2_ref)


def prepare_contrast_params(params):
    """Hoist the f32->bf16 weight casts out of the per-forward hot path (call once)."""
    w1, b1, w2, b2 = params  # stored (in, out)
    return (w1.astype(jnp.bfloat16), b1.astype(jnp.float32).reshape(1, -1),
            w2.astype(jnp.bfloat16), b2.astype(jnp.float32).reshape(1, -1))


def contrast_logits(embd1, prepared_params, embd2=None):
    w1, b1, w2, b2 = prepared_params  # bf16 weights, f32 biases (from prepare_contrast_params)
    D = w1.shape[0]
    O = w2.shape[1]
    B = embd1.shape[0]
    Bp, bt = _plan_batch(B)

    if embd2 is None:
        x = _pad_rows(embd1.astype(jnp.bfloat16), Bp)
        out = pl.pallas_call(
            _contrast1_kernel,
            out_shape=jax.ShapeDtypeStruct((Bp, O), jnp.float32),
            grid=(Bp // bt,),
            in_specs=[pl.BlockSpec((bt, D), lambda i: (i, 0))] + _weight_specs(D, O),
            out_specs=pl.BlockSpec((bt, O), lambda i: (i, 0)),
            compiler_params=_COMPILER_PARAMS,
        )(x, w1, b1, w2, b2)
        return out[:B]

    assert embd2.shape[0] == B, "embd1/embd2 must share the batch dimension"
    # Both embeddings fed to ONE pallas_call as separate streams: no concat/pad copy pass over
    # HBM, weights (~1.3 MB bf16) read once, two tiles of MXU work per grid step.
    x1 = _pad_rows(embd1.astype(jnp.bfloat16), Bp)
    x2 = _pad_rows(embd2.astype(jnp.bfloat16), Bp)
    o1, o2 = pl.pallas_call(
        _contrast2_kernel,
        out_shape=(jax.ShapeDtypeStruct((Bp, O), jnp.float32),
                   jax.ShapeDtypeStruct((Bp, O), jnp.float32)),
        grid=(Bp // bt,),
        in_specs=[pl.BlockSpec((bt, D), lambda i: (i, 0)),
                  pl.BlockSpec((bt, D), lambda i: (i, 0))] + _weight_specs(D, O),
        out_specs=(pl.BlockSpec((bt, O), lambda i: (i, 0)),
                   pl.BlockSpec((bt, O), lambda i: (i, 0))),
        compiler_params=_COMPILER_PARAMS,
    )(x1, x2, w1, b1, w2, b2)
    return o1[:B], o2[:B]


# --------------------------------------------------------------------------
# Kernel 3 (optional fusion): both SCCL heads from one embedding read
# --------------------------------------------------------------------------
def _fused_heads_kernel(emb_ref, ct_ref, csq_ref, w1_ref, b1_ref, w2_ref, b2_ref,
                        prob_ref, feat_ref):
    e16 = emb_ref[...]
    prob_ref[...] = _cluster_prob_body(e16, ct_ref, csq_ref)
    feat_ref[...] = _contrast_body(e16, w1_ref, b1_ref, w2_ref, b2_ref)


def cluster_prob_and_contrast(embeddings, cluster_centers, prepared_params):
    """Fused heads: the dominant (B,768) HBM read is shared by both outputs."""
    w1, b1, w2, b2 = prepared_params
    B, D = embeddings.shape
    K = cluster_centers.shape[0]
    O = w2.shape[1]
    Bp, bt = _plan_batch(B)

    x = _pad_rows(embeddings.astype(jnp.bfloat16), Bp)
    ct, c_sq = _prep_centers(cluster_centers)

    probs, feats = pl.pallas_call(
        _fused_heads_kernel,
        out_shape=(jax.ShapeDtypeStruct((Bp, K), jnp.float32),
                   jax.ShapeDtypeStruct((Bp, O), jnp.float32)),
        grid=(Bp // bt,),
        in_specs=[pl.BlockSpec((bt, D), lambda i: (i, 0)),
                  pl.BlockSpec((D, K), lambda i: (0, 0)),
                  pl.BlockSpec((1, K), lambda i: (0, 0))] + _weight_specs(D, O),
        out_specs=(pl.BlockSpec((bt, K), lambda i: (i, 0)),
                   pl.BlockSpec((bt, O), lambda i: (i, 0))),
        compiler_params=_COMPILER_PARAMS,
    )(x, ct, c_sq, w1, b1, w2, b2)
    return probs[:B], feats[:B]


# --------------------------------------------------------------------------
# Deterministic parameter initialization (mirrors init_model shapes)
# --------------------------------------------------------------------------
def init_params(key, num_clusters):
    k1, k2, k3, k4, k5 = jax.random.split(key, 5)
    s1 = 1.0 / jnp.sqrt(EMB_SIZE)
    w1 = jax.random.uniform(k1, (EMB_SIZE, EMB_SIZE), jnp.float32, -s1, s1)
    b1 = jax.random.uniform(k2, (1, EMB_SIZE), jnp.float32, -s1, s1)
    w2 = jax.random.uniform(k3, (EMB_SIZE, CONTRAST_DIM), jnp.float32, -s1, s1)
    b2 = jax.random.uniform(k4, (1, CONTRAST_DIM), jnp.float32, -s1, s1)
    cluster_centers = jax.random.normal(k5, (num_clusters, EMB_SIZE), jnp.float32)
    return (w1, b1, w2, b2), cluster_centers


# --------------------------------------------------------------------------
# Pure-JAX references (for correctness checks only)
# --------------------------------------------------------------------------
def _cluster_prob_ref(e, c):
    diff = e[:, None, :] - c[None, :, :]
    norm_sq = jnp.sum(diff * diff, axis=2)
    num = 1.0 / (1.0 + norm_sq / ALPHA)
    if _POWER != 1.0:
        num = num ** _POWER
    return num / jnp.sum(num, axis=1, keepdims=True)


def _contrast_ref(x, params):
    w1, b1, w2, b2 = params
    h = jnp.maximum(x @ w1 + b1, 0.0)
    z = h @ w2 + b2
    n = jnp.sqrt(jnp.sum(z * z, axis=1, keepdims=True))
    return z / jnp.maximum(n, 1e-12)


if __name__ == "__main__":
    key = jax.random.PRNGKey(0)
    kp, ke1, ke2 = jax.random.split(key, 3)

    B = 8            # batch
    K = 8            # number of clusters

    params, cluster_centers = init_params(kp, K)
    contrast_params = prepare_contrast_params(params)   # bf16 weights, cast once

    embd1 = jax.random.normal(ke1, (B, EMB_SIZE), jnp.float32)
    embd2 = jax.random.normal(ke2, (B, EMB_SIZE), jnp.float32)

    probs = get_cluster_prob(embd1, cluster_centers)
    feat1, feat2 = contrast_logits(embd1, contrast_params, embd2)
    feat_single = contrast_logits(embd1, contrast_params)
    probs_fused, feat_fused = cluster_prob_and_contrast(embd1, cluster_centers, contrast_params)
    jax.block_until_ready((probs, feat1, feat2, feat_single, probs_fused, feat_fused))

    # Shape checks
    assert probs.shape == (B, K)
    assert feat1.shape == (B, CONTRAST_DIM) and feat2.shape == (B, CONTRAST_DIM)
    assert feat_single.shape == (B, CONTRAST_DIM)
    assert probs_fused.shape == (B, K) and feat_fused.shape == (B, CONTRAST_DIM)

    # Invariants (exact row normalization for probs; unit-norm contrast features)
    assert jnp.allclose(jnp.sum(probs, axis=1), 1.0, atol=1e-3)
    assert jnp.allclose(jnp.linalg.norm(feat1, axis=1), 1.0, atol=1e-3)
    assert jnp.allclose(jnp.linalg.norm(feat2, axis=1), 1.0, atol=1e-3)

    # Reference comparisons (loose tolerances: bf16 activation/weight streams, approx reciprocal)
    probs_ref = _cluster_prob_ref(embd1, cluster_centers)
    assert jnp.allclose(probs, probs_ref, atol=1e-2, rtol=1e-2)
    f1_ref = _contrast_ref(embd1, params)
    f2_ref = _contrast_ref(embd2, params)
    assert jnp.allclose(feat1, f1_ref, atol=2e-2)
    assert jnp.allclose(feat2, f2_ref, atol=2e-2)
    assert jnp.allclose(feat_single, feat1, atol=2e-2)

    # Fused kernel matches the separate kernels
    assert jnp.allclose(probs_fused, probs, atol=1e-3)
    assert jnp.allclose(feat_fused, feat1, atol=1e-3)

    print("KERNEL_OK")
</pallas_src>

<mosaic_0001>
module attributes {stable_mosaic.version = 11 : i64} {
  func.func @_cluster_prob_kernel(%arg0: i32, %arg1: memref<16x768xbf16, #tpu.memory_space<vmem>>, %arg2: memref<768x8xbf16, #tpu.memory_space<vmem>>, %arg3: memref<1x8xf32, #tpu.memory_space<vmem>>, %arg4: memref<16x8xf32, #tpu.memory_space<vmem>>) attributes {dimension_semantics = [#tpu.dimension_semantics<parallel>], iteration_bounds = array<i64: 1>, scalar_prefetch = 0 : i64, scratch_operands = 0 : i64, tpu.core_type = #tpu.core_type<tc>, window_params = [{transform_indices = @transform_0, window_bounds = array<i64: 16, 768>}, {pipeline_mode = #tpu.pipeline_mode<synchronous>, transform_indices = @transform_1, window_bounds = array<i64: 768, 8>}, {pipeline_mode = #tpu.pipeline_mode<synchronous>, transform_indices = @transform_2, window_bounds = array<i64: 1, 8>}, {transform_indices = @transform_3, window_bounds = array<i64: 16, 8>}]} {
    %c0 = arith.constant 0 : index
    %c0_0 = arith.constant 0 : index
    %0 = vector.load %arg1[%c0, %c0_0] : memref<16x768xbf16, #tpu.memory_space<vmem>>, vector<16x768xbf16>
    %1 = arith.extf %0 : vector<16x768xbf16> to vector<16x768xf32>
    %2 = arith.mulf %1, %1 : vector<16x768xf32>
    %cst = arith.constant dense<0.000000e+00> : vector<16xf32>
    %3 = vector.multi_reduction <add>, %2, %cst [1] : vector<16x768xf32> to vector<16xf32>
    %4 = vector.shape_cast %3 : vector<16xf32> to vector<16x1xf32>
    %c0_1 = arith.constant 0 : index
    %c0_2 = arith.constant 0 : index
    %5 = vector.load %arg2[%c0_1, %c0_2] : memref<768x8xbf16, #tpu.memory_space<vmem>>, vector<768x8xbf16>
    %cst_3 = arith.constant dense<0.000000e+00> : vector<16x8xf32>
    %6 = tpu.matmul %0, %5, %cst_3 {dimension_numbers = #tpu.dot_dimension_numbers<[1], [0], [0], [1], [0, 0, 1, 1], [], []>} : vector<16x768xbf16>, vector<768x8xbf16>, vector<16x8xf32> -> vector<16x8xf32>
    %c0_4 = arith.constant 0 : index
    %c0_5 = arith.constant 0 : index
    %7 = vector.load %arg3[%c0_4, %c0_5] : memref<1x8xf32, #tpu.memory_space<vmem>>, vector<1x8xf32>
    %8 = vector.broadcast %4 : vector<16x1xf32> to vector<16x8xf32>
    %9 = vector.broadcast %7 : vector<1x8xf32> to vector<16x8xf32>
    %10 = arith.addf %8, %9 : vector<16x8xf32>
    %cst_6 = arith.constant 2.000000e+00 : f32
    %11 = vector.broadcast %cst_6 : f32 to vector<16x8xf32>
    %12 = arith.mulf %11, %6 : vector<16x8xf32>
    %13 = arith.subf %10, %12 : vector<16x8xf32>
    %cst_7 = arith.constant 0.000000e+00 : f32
    %14 = vector.broadcast %cst_7 : f32 to vector<16x8xf32>
    %15 = arith.maximumf %13, %14 : vector<16x8xf32>
    %cst_8 = arith.constant 1.000000e+00 : f32
    %16 = vector.broadcast %cst_8 : f32 to vector<16x8xf32>
    %17 = arith.mulf %15, %16 : vector<16x8xf32>
    %cst_9 = arith.constant 1.000000e+00 : f32
    %18 = vector.broadcast %cst_9 : f32 to vector<16x8xf32>
    %19 = arith.addf %18, %17 : vector<16x8xf32>
    %20 = tpu.reciprocal %19 {approx = true} : vector<16x8xf32> -> vector<16x8xf32>
    %cst_10 = arith.constant dense<0.000000e+00> : vector<16xf32>
    %21 = vector.multi_reduction <add>, %20, %cst_10 [1] : vector<16x8xf32> to vector<16xf32>
    %22 = vector.shape_cast %21 : vector<16xf32> to vector<16x1xf32>
    %23 = vector.broadcast %22 : vector<16x1xf32> to vector<16x8xf32>
    %24 = arith.divf %20, %23 : vector<16x8xf32>
    %c0_11 = arith.constant 0 : index
    %c0_12 = arith.constant 0 : index
    %25 = vector.load %arg4[%c0_11, %c0_12] : memref<16x8xf32, #tpu.memory_space<vmem>>, vector<16x8xf32>
    tpu.vector_store %arg4[%c0_11, %c0_12], %24 {strides = array<i32>} : memref<16x8xf32, #tpu.memory_space<vmem>>, vector<16x8xf32>,
    return
  }
  func.func @transform_0(%arg0: i32) -> (i32, i32) {
    %c0_i32 = arith.constant 0 : i32
    %c0_i32_0 = arith.constant 0 : i32
    return %arg0, %c0_i32 : i32, i32
  }
  func.func @transform_1(%arg0: i32) -> (i32, i32) {
    %c0_i32 = arith.constant 0 : i32
    %c0_i32_0 = arith.constant 0 : i32
    %c0_i32_1 = arith.constant 0 : i32
    return %c0_i32, %c0_i32_0 : i32, i32
  }
  func.func @transform_2(%arg0: i32) -> (i32, i32) {
    %c0_i32 = arith.constant 0 : i32
    %c0_i32_0 = arith.constant 0 : i32
    %c0_i32_1 = arith.constant 0 : i32
    return %c0_i32, %c0_i32_0 : i32, i32
  }
  func.func @transform_3(%arg0: i32) -> (i32, i32) {
    %c0_i32 = arith.constant 0 : i32
    %c0_i32_0 = arith.constant 0 : i32
    return %arg0, %c0_i32 : i32, i32
  }
}

</mosaic_0001>

<llo_original>
// kernel: tpu_custom_call.1
$region0: #{tpu_custom_call.1}
  #allocation0 [shape = 'u32[]', space=smem, size = 0x4, offset = 0x4, fixed_abs, tag = 'smem constant byte address 0x4 - core index']
  #allocation1 [shape = 'u32[72,128]{1,0:T(1,128)}', space=vmem, size = 0x9000, scoped, tag = 'internal scratch']
  %s0 = inlined_call_operand.vmem [shape: bf16[16,768], index: 0, kind: input, shape index: {}]
  %s1 = inlined_call_operand.vmem [shape: bf16[768,8], index: 1, kind: input, shape index: {}]
  %s2 = inlined_call_operand.vmem [shape: f32[1,8], index: 2, kind: input, shape index: {}]
  %s3 = inlined_call_operand.vmem [shape: f32[16,8], index: 3, kind: output, shape index: {}]
  %s4 = sld [smem:[#allocation0]]
  $region22: #{tpu_custom_call.1} parent=0
    _
  %s6 = ssub.s32 1, %s4
  %s7 = scalar_select 0, %s6, %s4
  // Predicated region
  $region2: #{tpu_custom_call.1} parent=0 // pred_check
    _
  $region3: #{tpu_custom_call.1} parent=0 // pred_check_branch
    %9 = sbr.rel (0) target = $region5
  $region4: #{tpu_custom_call.1} parent=0 // pred_region
    _
  $region5: #{tpu_custom_call.1} parent=0 // pred_fallthru
    _
  // Predicated region
  $region6: #{tpu_custom_call.1} parent=0 // pred_check
    _
  $region7: #{tpu_custom_call.1} parent=0 // pred_check_branch
    %11 = sbr.rel (0) target = $region9
  $region8: #{tpu_custom_call.1} parent=0 // pred_region
    _
  $region9: #{tpu_custom_call.1} parent=0 // pred_fallthru
    _
  // Predicated region
  $region10: #{tpu_custom_call.1} parent=0 // pred_check
    _
  $region11: #{tpu_custom_call.1} parent=0 // pred_check_branch
    %13 = sbr.rel (0) target = $region13
  $region12: #{tpu_custom_call.1} parent=0 // pred_region
    _
  $region13: #{tpu_custom_call.1} parent=0 // pred_fallthru
    _
  %v14 = vld [vmem:[%s0] sm:$0xff]
  %v15 = vld [vmem:[%s0 + $0x8] sm:$0xff]
  %v16 = vld [vmem:[%s0 + $0x10] sm:$0xff]
  %v17 = vld [vmem:[%s0 + $0x18] sm:$0xff]
  %v18 = vld [vmem:[%s0 + $0x20] sm:$0xff]
  %v19 = vld [vmem:[%s0 + $0x28] sm:$0xff]
  %v20 = vunpack.c.l.bf16 %v14
  %v21 = vunpack.c.h.bf16 %v14
  %v22 = vunpack.c.l.bf16 %v15
  %v23 = vunpack.c.h.bf16 %v15
  %v24 = vunpack.c.l.bf16 %v16
  %v25 = vunpack.c.h.bf16 %v16
  %v26 = vunpack.c.l.bf16 %v17
  %v27 = vunpack.c.h.bf16 %v17
  %v28 = vunpack.c.l.bf16 %v18
  %v29 = vunpack.c.h.bf16 %v18
  %v30 = vunpack.c.l.bf16 %v19
  %v31 = vunpack.c.h.bf16 %v19
  %v32 = vmul.f32 %v20, %v20
  %v33 = vmul.f32 %v21, %v21
  %v34 = vmul.f32 %v22, %v22
  %v35 = vmul.f32 %v23, %v23
  %v36 = vmul.f32 %v24, %v24
  %v37 = vmul.f32 %v25, %v25
  %v38 = vmul.f32 %v26, %v26
  %v39 = vmul.f32 %v27, %v27
  %v40 = vmul.f32 %v28, %v28
  %v41 = vmul.f32 %v29, %v29
  %v42 = vmul.f32 %v30, %v30
  %v43 = vmul.f32 %v31, %v31
  %v44 = vadd.f32 %v32, %v33
  %v45 = vadd.f32 %v44, %v34
  %v46 = vadd.f32 %v45, %v35
  %v47 = vadd.f32 %v46, %v36
  %v48 = vadd.f32 %v47, %v37
  %49 = vadd.xlane.f32.xlu0 %v48
  %v50 = vpop.xlane.xlu0 %49
  %v51 = vadd.f32 %v38, %v39
  %v52 = vadd.f32 %v51, %v40
  %v53 = vadd.f32 %v52, %v41
  %v54 = vadd.f32 %v53, %v42
  %v55 = vadd.f32 %v54, %v43
  %56 = vadd.xlane.f32.xlu0 %v55
  %v57 = vpop.xlane.xlu0 %56
  %v58 = vld [vmem:[%s1] sm:$0xf]
  %v59 = vld [vmem:[%s1 + $0x4] sm:$0xf]
  %v60 = vld [vmem:[%s1 + $0x8] sm:$0xf]
  %v61 = vld [vmem:[%s1 + $0xc] sm:$0xf]
  %v62 = vld [vmem:[%s1 + $0x10] sm:$0xf]
  %v63 = vld [vmem:[%s1 + $0x14] sm:$0xf]
  %v64 = vld [vmem:[%s1 + $0x18] sm:$0xf]
  %v65 = vld [vmem:[%s1 + $0x1c] sm:$0xf]
  %v66 = vld [vmem:[%s1 + $0x20] sm:$0xf]
  %v67 = vld [vmem:[%s1 + $0x24] sm:$0xf]
  %v68 = vld [vmem:[%s1 + $0x28] sm:$0xf]
  %v69 = vld [vmem:[%s1 + $0x2c] sm:$0xf]
  %v70 = vld [vmem:[%s1 + $0x30] sm:$0xf]
  %v71 = vld [vmem:[%s1 + $0x34] sm:$0xf]
  %v72 = vld [vmem:[%s1 + $0x38] sm:$0xf]
  %v73 = vld [vmem:[%s1 + $0x3c] sm:$0xf]
  %v74 = vld [vmem:[%s1 + $0x40] sm:$0xf]
  %v75 = vld [vmem:[%s1 + $0x44] sm:$0xf]
  %v76 = vld [vmem:[%s1 + $0x48] sm:$0xf]
  %v77 = vld [vmem:[%s1 + $0x4c] sm:$0xf]
  %v78 = vld [vmem:[%s1 + $0x50] sm:$0xf]
  %v79 = vld [vmem:[%s1 + $0x54] sm:$0xf]
  %v80 = vld [vmem:[%s1 + $0x58] sm:$0xf]
  %v81 = vld [vmem:[%s1 + $0x5c] sm:$0xf]
  %v82 = vld [vmem:[%s1 + $0x60] sm:$0xf]
  %v83 = vld [vmem:[%s1 + $0x64] sm:$0xf]
  %v84 = vld [vmem:[%s1 + $0x68] sm:$0xf]
  %v85 = vld [vmem:[%s1 + $0x6c] sm:$0xf]
  %v86 = vld [vmem:[%s1 + $0x70] sm:$0xf]
  %v87 = vld [vmem:[%s1 + $0x74] sm:$0xf]
  %v88 = vld [vmem:[%s1 + $0x78] sm:$0xf]
  %v89 = vld [vmem:[%s1 + $0x7c] sm:$0xf]
  %v90 = vld [vmem:[%s1 + $0x80] sm:$0xf]
  %v91 = vld [vmem:[%s1 + $0x84] sm:$0xf]
  %v92 = vld [vmem:[%s1 + $0x88] sm:$0xf]
  %v93 = vld [vmem:[%s1 + $0x8c] sm:$0xf]
  %v94 = vld [vmem:[%s1 + $0x90] sm:$0xf]
  %v95 = vld [vmem:[%s1 + $0x94] sm:$0xf]
  %v96 = vld [vmem:[%s1 + $0x98] sm:$0xf]
  %v97 = vld [vmem:[%s1 + $0x9c] sm:$0xf]
  %v98 = vld [vmem:[%s1 + $0xa0] sm:$0xf]
  %v99 = vld [vmem:[%s1 + $0xa4] sm:$0xf]
  %v100 = vld [vmem:[%s1 + $0xa8] sm:$0xf]
  %v101 = vld [vmem:[%s1 + $0xac] sm:$0xf]
  %v102 = vld [vmem:[%s1 + $0xb0] sm:$0xf]
  %v103 = vld [vmem:[%s1 + $0xb4] sm:$0xf]
  %v104 = vld [vmem:[%s1 + $0xb8] sm:$0xf]
  %v105 = vld [vmem:[%s1 + $0xbc] sm:$0xf]
  %v106 = vld [vmem:[%s1 + $0xc0] sm:$0xf]
  %v107 = vld [vmem:[%s1 + $0xc4] sm:$0xf]
  %v108 = vld [vmem:[%s1 + $0xc8] sm:$0xf]
  %v109 = vld [vmem:[%s1 + $0xcc] sm:$0xf]
  %v110 = vld [vmem:[%s1 + $0xd0] sm:$0xf]
  %v111 = vld [vmem:[%s1 + $0xd4] sm:$0xf]
  %v112 = vld [vmem:[%s1 + $0xd8] sm:$0xf]
  %v113 = vld [vmem:[%s1 + $0xdc] sm:$0xf]
  %v114 = vld [vmem:[%s1 + $0xe0] sm:$0xf]
  %v115 = vld [vmem:[%s1 + $0xe4] sm:$0xf]
  %v116 = vld [vmem:[%s1 + $0xe8] sm:$0xf]
  %v117 = vld [vmem:[%s1 + $0xec] sm:$0xf]
  %v118 = vld [vmem:[%s1 + $0xf0] sm:$0xf]
  %v119 = vld [vmem:[%s1 + $0xf4] sm:$0xf]
  %v120 = vld [vmem:[%s1 + $0xf8] sm:$0xf]
  %v121 = vld [vmem:[%s1 + $0xfc] sm:$0xf]
  %v122 = vld [vmem:[%s1 + $0x100] sm:$0xf]
  %v123 = vld [vmem:[%s1 + $0x104] sm:$0xf]
  %v124 = vld [vmem:[%s1 + $0x108] sm:$0xf]
  %v125 = vld [vmem:[%s1 + $0x10c] sm:$0xf]
  %v126 = vld [vmem:[%s1 + $0x110] sm:$0xf]
  %v127 = vld [vmem:[%s1 + $0x114] sm:$0xf]
  %v128 = vld [vmem:[%s1 + $0x118] sm:$0xf]
  %v129 = vld [vmem:[%s1 + $0x11c] sm:$0xf]
  %v130 = vld [vmem:[%s1 + $0x120] sm:$0xf]
  %v131 = vld [vmem:[%s1 + $0x124] sm:$0xf]
  %v132 = vld [vmem:[%s1 + $0x128] sm:$0xf]
  %v133 = vld [vmem:[%s1 + $0x12c] sm:$0xf]
  %v134 = vld [vmem:[%s1 + $0x130] sm:$0xf]
  %v135 = vld [vmem:[%s1 + $0x134] sm:$0xf]
  %v136 = vld [vmem:[%s1 + $0x138] sm:$0xf]
  %v137 = vld [vmem:[%s1 + $0x13c] sm:$0xf]
  %v138 = vld [vmem:[%s1 + $0x140] sm:$0xf]
  %v139 = vld [vmem:[%s1 + $0x144] sm:$0xf]
  %v140 = vld [vmem:[%s1 + $0x148] sm:$0xf]
  %v141 = vld [vmem:[%s1 + $0x14c] sm:$0xf]
  %v142 = vld [vmem:[%s1 + $0x150] sm:$0xf]
  %v143 = vld [vmem:[%s1 + $0x154] sm:$0xf]
  %v144 = vld [vmem:[%s1 + $0x158] sm:$0xf]
  %v145 = vld [vmem:[%s1 + $0x15c] sm:$0xf]
  %v146 = vld [vmem:[%s1 + $0x160] sm:$0xf]
  %v147 = vld [vmem:[%s1 + $0x164] sm:$0xf]
  %v148 = vld [vmem:[%s1 + $0x168] sm:$0xf]
  %v149 = vld [vmem:[%s1 + $0x16c] sm:$0xf]
  %v150 = vld [vmem:[%s1 + $0x170] sm:$0xf]
  %v151 = vld [vmem:[%s1 + $0x174] sm:$0xf]
  %v152 = vld [vmem:[%s1 + $0x178] sm:$0xf]
  %v153 = vld [vmem:[%s1 + $0x17c] sm:$0xf]
  %v160 = vunpack.c.l.b16 %v14
  %v161 = vunpack.c.h.b16 %v14
  %v162 = vunpack.c.l.b16 %v15
  %v163 = vunpack.c.h.b16 %v15
  %v164 = vunpack.c.l.b16 %v16
  %v165 = vunpack.c.h.b16 %v16
  %v166 = vunpack.c.l.b16 %v17
  %v167 = vunpack.c.h.b16 %v17
  %v168 = vunpack.c.l.b16 %v18
  %v169 = vunpack.c.h.b16 %v18
  %v170 = vunpack.c.l.b16 %v19
  %v171 = vunpack.c.h.b16 %v19
  %v172 = vpack.c.b16 %v166, %v160
  %v173 = vpack.c.b16 %v167, %v161
  %v174 = vpack.c.b16 %v168, %v162
  %v175 = vpack.c.b16 %v169, %v163
  %v176 = vpack.c.b16 %v170, %v164
  %v177 = vpack.c.b16 %v171, %v165
  %v280 = vunpack.c.l.b16 %v58
  %v281 = vunpack.c.l.b16 %v59
  %v282 = vunpack.c.l.b16 %v60
  %v283 = vunpack.c.l.b16 %v61
  %v284 = vunpack.c.l.b16 %v62
  %v285 = vunpack.c.l.b16 %v63
  %v286 = vunpack.c.l.b16 %v64
  %v287 = vunpack.c.l.b16 %v65
  %v288 = vunpack.c.l.b16 %v66
  %v289 = vunpack.c.l.b16 %v67
  %v290 = vunpack.c.l.b16 %v68
  %v291 = vunpack.c.l.b16 %v69
  %v292 = vunpack.c.l.b16 %v70
  %v293 = vunpack.c.l.b16 %v71
  %v294 = vunpack.c.l.b16 %v72
  %v295 = vunpack.c.l.b16 %v73
  %v296 = vunpack.c.l.b16 %v74
  %v297 = vunpack.c.l.b16 %v75
  %v298 = vunpack.c.l.b16 %v76
  %v299 = vunpack.c.l.b16 %v77
  %v300 = vunpack.c.l.b16 %v78
  %v301 = vunpack.c.l.b16 %v79
  %v302 = vunpack.c.l.b16 %v80
  %v303 = vunpack.c.l.b16 %v81
  %v304 = vunpack.c.l.b16 %v82
  %v305 = vunpack.c.l.b16 %v83
  %v306 = vunpack.c.l.b16 %v84
  %v307 = vunpack.c.l.b16 %v85
  %v308 = vunpack.c.l.b16 %v86
  %v309 = vunpack.c.l.b16 %v87
  %v310 = vunpack.c.l.b16 %v88
  %v311 = vunpack.c.l.b16 %v89
  %v312 = vunpack.c.l.b16 %v90
  %v313 = vunpack.c.l.b16 %v91
  %v314 = vunpack.c.l.b16 %v92
  %v315 = vunpack.c.l.b16 %v93
  %v316 = vunpack.c.l.b16 %v94
  %v317 = vunpack.c.l.b16 %v95
  %v318 = vunpack.c.l.b16 %v96
  %v319 = vunpack.c.l.b16 %v97
  %v320 = vunpack.c.l.b16 %v98
  %v321 = vunpack.c.l.b16 %v99
  %v322 = vunpack.c.l.b16 %v100
  %v323 = vunpack.c.l.b16 %v101
  %v324 = vunpack.c.l.b16 %v102
  %v325 = vunpack.c.l.b16 %v103
  %v326 = vunpack.c.l.b16 %v104
  %v327 = vunpack.c.l.b16 %v105
  %v328 = vunpack.c.l.b16 %v106
  %v329 = vunpack.c.l.b16 %v107
  %v330 = vunpack.c.l.b16 %v108
  %v331 = vunpack.c.l.b16 %v109
  %v332 = vunpack.c.l.b16 %v110
  %v333 = vunpack.c.l.b16 %v111
  %v334 = vunpack.c.l.b16 %v112
  %v335 = vunpack.c.l.b16 %v113
  %v336 = vunpack.c.l.b16 %v114
  %v337 = vunpack.c.l.b16 %v115
  %v338 = vunpack.c.l.b16 %v116
  %v339 = vunpack.c.l.b16 %v117
  %v340 = vunpack.c.l.b16 %v118
  %v341 = vunpack.c.l.b16 %v119
  %v342 = vunpack.c.l.b16 %v120
  %v343 = vunpack.c.l.b16 %v121
  %v344 = vunpack.c.l.b16 %v122
  %v345 = vunpack.c.l.b16 %v123
  %v346 = vunpack.c.l.b16 %v124
  %v347 = vunpack.c.l.b16 %v125
  %v348 = vunpack.c.l.b16 %v126
  %v349 = vunpack.c.l.b16 %v127
  %v350 = vunpack.c.l.b16 %v128
  %v351 = vunpack.c.l.b16 %v129
  %v352 = vunpack.c.l.b16 %v130
  %v353 = vunpack.c.l.b16 %v131
  %v354 = vunpack.c.l.b16 %v132
  %v355 = vunpack.c.l.b16 %v133
  %v356 = vunpack.c.l.b16 %v134
  %v357 = vunpack.c.l.b16 %v135
  %v358 = vunpack.c.l.b16 %v136
  %v359 = vunpack.c.l.b16 %v137
  %v360 = vunpack.c.l.b16 %v138
  %v361 = vunpack.c.l.b16 %v139
  %v362 = vunpack.c.l.b16 %v140
  %v363 = vunpack.c.l.b16 %v141
  %v364 = vunpack.c.l.b16 %v142
  %v365 = vunpack.c.l.b16 %v143
  %v366 = vunpack.c.l.b16 %v144
  %v367 = vunpack.c.l.b16 %v145
  %v368 = vunpack.c.l.b16 %v146
  %v369 = vunpack.c.l.b16 %v147
  %v370 = vunpack.c.l.b16 %v148
  %v371 = vunpack.c.l.b16 %v149
  %v372 = vunpack.c.l.b16 %v150
  %v373 = vunpack.c.l.b16 %v151
  %v374 = vunpack.c.l.b16 %v152
  %v375 = vunpack.c.l.b16 %v153
  %v376 = vpack.c.b16 %v281, %v280
  %v377 = vpack.c.b16 %v283, %v282
  %v378 = vpack.c.b16 %v285, %v284
  %v379 = vpack.c.b16 %v287, %v286
  %v380 = vpack.c.b16 %v289, %v288
  %v381 = vpack.c.b16 %v291, %v290
  %v382 = vpack.c.b16 %v293, %v292
  %v383 = vpack.c.b16 %v295, %v294
  %v384 = vpack.c.b16 %v297, %v296
  %v385 = vpack.c.b16 %v299, %v298
  %v386 = vpack.c.b16 %v301, %v300
  %v387 = vpack.c.b16 %v303, %v302
  %v388 = vpack.c.b16 %v305, %v304
  %v389 = vpack.c.b16 %v307, %v306
  %v390 = vpack.c.b16 %v309, %v308
  %v391 = vpack.c.b16 %v311, %v310
  %v392 = vpack.c.b16 %v313, %v312
  %v393 = vpack.c.b16 %v315, %v314
  %v394 = vpack.c.b16 %v317, %v316
  %v395 = vpack.c.b16 %v319, %v318
  %v396 = vpack.c.b16 %v321, %v320
  %v397 = vpack.c.b16 %v323, %v322
  %v398 = vpack.c.b16 %v325, %v324
  %v399 = vpack.c.b16 %v327, %v326
  %v400 = vpack.c.b16 %v329, %v328
  %v401 = vpack.c.b16 %v331, %v330
  %v402 = vpack.c.b16 %v333, %v332
  %v403 = vpack.c.b16 %v335, %v334
  %v404 = vpack.c.b16 %v337, %v336
  %v405 = vpack.c.b16 %v339, %v338
  %v406 = vpack.c.b16 %v341, %v340
  %v407 = vpack.c.b16 %v343, %v342
  %v408 = vpack.c.b16 %v345, %v344
  %v409 = vpack.c.b16 %v347, %v346
  %v410 = vpack.c.b16 %v349, %v348
  %v411 = vpack.c.b16 %v351, %v350
  %v412 = vpack.c.b16 %v353, %v352
  %v413 = vpack.c.b16 %v355, %v354
  %v414 = vpack.c.b16 %v357, %v356
  %v415 = vpack.c.b16 %v359, %v358
  %v416 = vpack.c.b16 %v361, %v360
  %v417 = vpack.c.b16 %v363, %v362
  %v418 = vpack.c.b16 %v365, %v364
  %v419 = vpack.c.b16 %v367, %v366
  %v420 = vpack.c.b16 %v369, %v368
  %v421 = vpack.c.b16 %v371, %v370
  %v422 = vpack.c.b16 %v373, %v372
  %v423 = vpack.c.b16 %v375, %v374
  %472 = vmatpush.bf16.msra.mxu0 %v383
  %473 = vmatpush.bf16.msra.mxu0 %v382
  %474 = vmatpush.bf16.msra.mxu0 %v381
  %475 = vmatpush.bf16.msra.mxu0 %v380
  %476 = vmatpush.bf16.msra.mxu0 %v379
  %477 = vmatpush.bf16.msra.mxu0 %v378
  %478 = vmatpush.bf16.msra.mxu0 %v377
  %479 = vmatpush.bf16.msra.mxu0 %v376
  %480 = vmatmul.bf16.gmra.mxu0 %v172
  %v481 = vpop.f32.mrf.mxu0
  %v482 = vadd.f32 0.0, %v481
  %v483 = vpop.f32.mrf.mxu0
  %v484 = vadd.f32 0.0, %v483
  %485 = vdwg.mxu0
  %486 = vmatpush.bf16.msra.mxu0 %v391
  %487 = vmatpush.bf16.msra.mxu0 %v390
  %488 = vmatpush.bf16.msra.mxu0 %v389
  %489 = vmatpush.bf16.msra.mxu0 %v388
  %490 = vmatpush.bf16.msra.mxu0 %v387
  %491 = vmatpush.bf16.msra.mxu0 %v386
  %492 = vmatpush.bf16.msra.mxu0 %v385
  %493 = vmatpush.bf16.msra.mxu0 %v384
  %494 = vmatmul.bf16.gmra.mxu0 %v173
  %v495 = vpop.f32.mrf.mxu0
  %v496 = vadd.f32 %v482, %v495
  %v497 = vpop.f32.mrf.mxu0
  %v498 = vadd.f32 %v484, %v497
  %499 = vdwg.mxu0
  %500 = vmatpush.bf16.msra.mxu0 %v399
  %501 = vmatpush.bf16.msra.mxu0 %v398
  %502 = vmatpush.bf16.msra.mxu0 %v397
  %503 = vmatpush.bf16.msra.mxu0 %v396
  %504 = vmatpush.bf16.msra.mxu0 %v395
  %505 = vmatpush.bf16.msra.mxu0 %v394
  %506 = vmatpush.bf16.msra.mxu0 %v393
  %507 = vmatpush.bf16.msra.mxu0 %v392
  %508 = vmatmul.bf16.gmra.mxu0 %v174
  %v509 = vpop.f32.mrf.mxu0
  %v510 = vadd.f32 %v496, %v509
  %v511 = vpop.f32.mrf.mxu0
  %v512 = vadd.f32 %v498, %v511
  %513 = vdwg.mxu0
  %514 = vmatpush.bf16.msra.mxu0 %v407
  %515 = vmatpush.bf16.msra.mxu0 %v406
  %516 = vmatpush.bf16.msra.mxu0 %v405
  %517 = vmatpush.bf16.msra.mxu0 %v404
  %518 = vmatpush.bf16.msra.mxu0 %v403
  %519 = vmatpush.bf16.msra.mxu0 %v402
  %520 = vmatpush.bf16.msra.mxu0 %v401
  %521 = vmatpush.bf16.msra.mxu0 %v400
  %522 = vmatmul.bf16.gmra.mxu0 %v175
  %v523 = vpop.f32.mrf.mxu0
  %v524 = vadd.f32 %v510, %v523
  %v525 = vpop.f32.mrf.mxu0
  %v526 = vadd.f32 %v512, %v525
  %527 = vdwg.mxu0
  %528 = vmatpush.bf16.msra.mxu0 %v415
  %529 = vmatpush.bf16.msra.mxu0 %v414
  %530 = vmatpush.bf16.msra.mxu0 %v413
  %531 = vmatpush.bf16.msra.mxu0 %v412
  %532 = vmatpush.bf16.msra.mxu0 %v411
  %533 = vmatpush.bf16.msra.mxu0 %v410
  %534 = vmatpush.bf16.msra.mxu0 %v409
  %535 = vmatpush.bf16.msra.mxu0 %v408
  %536 = vmatmul.bf16.gmra.mxu0 %v176
  %v537 = vpop.f32.mrf.mxu0
  %v538 = vadd.f32 %v524, %v537
  %v539 = vpop.f32.mrf.mxu0
  %v540 = vadd.f32 %v526, %v539
  %541 = vdwg.mxu0
  %542 = vmatpush.bf16.msra.mxu0 %v423
  %543 = vmatpush.bf16.msra.mxu0 %v422
  %544 = vmatpush.bf16.msra.mxu0 %v421
  %545 = vmatpush.bf16.msra.mxu0 %v420
  %546 = vmatpush.bf16.msra.mxu0 %v419
  %547 = vmatpush.bf16.msra.mxu0 %v418
  %548 = vmatpush.bf16.msra.mxu0 %v417
  %549 = vmatpush.bf16.msra.mxu0 %v416
  %550 = vmatmul.bf16.gmra.mxu0 %v177
  %v551 = vpop.f32.mrf.mxu0
  %v552 = vadd.f32 %v538, %v551
  %v553 = vpop.f32.mrf.mxu0
  %v554 = vadd.f32 %v540, %v553
  %555 = vdwg.mxu0
  %v556 = vld [vmem:[%s2] sm:$0x1]
  %v558 = vperm.slane %v556, 0
  %v560 = vadd.f32 %v50, %v558
  %v561 = vadd.f32 %v57, %v558
  %v562 = vmul.f32 %v552, 2.0
  %v563 = vmul.f32 %v554, 2.0
  %v564 = vsub.f32 %v560, %v562
  %v565 = vsub.f32 %v561, %v563
  %v566 = vmax.f32 %v564, 0.0
  %v567 = vmax.f32 %v565, 0.0
  %v568 = vadd.f32 %v566, 1.0
  %v569 = vadd.f32 %v567, 1.0
  %v570 = vrcp.pop %v568
  %v571 = vrcp.pop %v569
  %vm572 = vcmask 64512
  %v573 = vsel %vm572, %v570, 0.0
  %574 = vadd.xlane.f32.xlu0 %v573
  %v575 = vpop.xlane.xlu0 %574
  %v576 = vsel %vm572, %v571, 0.0
  %577 = vadd.xlane.f32.xlu0 %v576
  %v578 = vpop.xlane.xlu0 %577
  %v579 = vrcp.pop %v575
  %v580 = vmul.f32 %v575, %v579
  %v581 = vsub.f32 1.0, %v580
  %v582 = vmul.f32 %v579, %v581
  %v583 = vadd.f32 %v579, %v582
  %vm584 = vweird.f32 %v575
  %vm585 = vweird.f32 %v579
  %vm586 = vmor %vm584, %vm585
  %v587 = vsel %vm586, %v579, %v583
  %v588 = vand.u32 2147483647, %v575
  %vm589 = vcmp.eq.f32.partialorder %v588, 8.507059e+37
  %v590 = vand.u32 %v575, 2147483648
  %v591 = vor.u32 1.1754944e-38, %v590
  %v592 = vsel %vm589, %v591, %v587
  %v593 = vmul.f32 %v570, %v592
  %v594 = vrcp.pop %v578
  %v595 = vmul.f32 %v578, %v594
  %v596 = vsub.f32 1.0, %v595
  %v597 = vmul.f32 %v594, %v596
  %v598 = vadd.f32 %v594, %v597
  %vm599 = vweird.f32 %v578
  %vm600 = vweird.f32 %v594
  %vm601 = vmor %vm599, %vm600
  %v602 = vsel %vm601, %v594, %v598
  %v603 = vand.u32 2147483647, %v578
  %vm604 = vcmp.eq.f32.partialorder %v603, 8.507059e+37
  %v605 = vand.u32 %v578, 2147483648
  %v606 = vor.u32 1.1754944e-38, %v605
  %v607 = vsel %vm604, %v606, %v602
  %v608 = vmul.f32 %v571, %v607
  %609 = vst.msk [vmem:[%s3] sm:$0xff] %vm572, %v593
  %610 = vst.msk [vmem:[%s3 + $0x8] sm:$0xff] %vm572, %v608
  // Predicated region
  $region14: #{tpu_custom_call.1} parent=0 // pred_check
    _
  $region15: #{tpu_custom_call.1} parent=0 // pred_check_branch
    %612 = sbr.rel (0) target = $region17
  $region16: #{tpu_custom_call.1} parent=0 // pred_region
    _
  $region17: #{tpu_custom_call.1} parent=0 // pred_fallthru
    _
  // Predicated region
  $region18: #{tpu_custom_call.1} parent=0 // pred_check
    _
  $region19: #{tpu_custom_call.1} parent=0 // pred_check_branch
    %614 = sbr.rel (0) target = $region21
  $region20: #{tpu_custom_call.1} parent=0 // pred_region
    _
  $region21: #{tpu_custom_call.1} parent=0 // pred_fallthru
    _

</llo_original>
